<compile_context>
chip_gen: v5e
topology: v5e:2x2
jax: 0.10.0
libtpu: 0.0.40
codegen_flags: <defaults>
</compile_context>

<pallas_src>
import jax
import jax.numpy as jnp
from jax.experimental import pallas as pl
from jax.experimental.pallas import tpu as pltpu


def _round_up(x, m):
    return ((x + m - 1) // m) * m


# -----------------------------------------------------------------------------
# Pallas kernel: fused (patches @ W + b) -> ReLU for one conv layer.
# -----------------------------------------------------------------------------
def conv_mm_kernel(x_ref, w_ref, b_ref, o_ref):
    acc = jnp.dot(x_ref[...], w_ref[...], preferred_element_type=jnp.float32)
    o_ref[...] = jnp.maximum(acc + b_ref[...], 0.0)


def conv_relu_matmul(patches, w_mat, bias_row, *, block_rows=256):
    """patches: (M, K) f32, w_mat: (K, N) f32, bias_row: (1, N) f32 -> (M, N) f32."""
    M, K = patches.shape
    _, N = w_mat.shape

    # Row-block over the flattened batch*spatial dimension (8-aligned sublane
    # blocks); pad M so the grid divides evenly, slice the pad back off after.
    bm = min(block_rows, _round_up(M, 8))
    Mp = _round_up(M, bm)
    if Mp != M:
        patches = jnp.pad(patches, ((0, Mp - M), (0, 0)))

    out = pl.pallas_call(
        conv_mm_kernel,
        out_shape=jax.ShapeDtypeStruct((Mp, N), jnp.float32),
        grid=(Mp // bm,),
        in_specs=[
            pl.BlockSpec((bm, K), lambda i: (i, 0)),   # streamed row block
            pl.BlockSpec((K, N), lambda i: (0, 0)),    # weights: VMEM-resident
            pl.BlockSpec((1, N), lambda i: (0, 0)),    # bias: VMEM-resident
        ],
        out_specs=pl.BlockSpec((bm, N), lambda i: (i, 0)),
        compiler_params=pltpu.CompilerParams(
            dimension_semantics=("parallel",)),
    )(patches, w_mat, bias_row)
    return out[:M]


# -----------------------------------------------------------------------------
# Wrapper glue: im2col patch extraction + layout plumbing (data movement only).
# -----------------------------------------------------------------------------
def _im2col(x_nhwc, k=3, stride=2, pad=1):
    B, H, W, C = x_nhwc.shape
    OH = (H + 2 * pad - k) // stride + 1
    OW = (W + 2 * pad - k) // stride + 1
    xp = jnp.pad(x_nhwc, ((0, 0), (pad, pad), (pad, pad), (0, 0)))
    cols = []
    for ky in range(k):
        for kx in range(k):
            patch = jax.lax.slice(
                xp,
                (0, ky, kx, 0),
                (B, ky + stride * (OH - 1) + 1, kx + stride * (OW - 1) + 1, C),
                (1, stride, stride, 1))
            cols.append(patch)                           # (B, OH, OW, C)
    patches = jnp.concatenate(cols, axis=-1)             # (B, OH, OW, k*k*C)
    return patches.reshape(B * OH * OW, k * k * C), (B, OH, OW)


@jax.jit
def unshared_encoder_forward(x_nchw, params):
    """UnsharedEncoder.forward.  params: list of (w (O,I,3,3), b (O,)) per conv."""
    # TODO(synk): im2col patch extraction and NCHW<->NHWC transposes are plain
    # JAX data movement; all conv FLOPs (matmul + bias + ReLU) run in the kernel.
    x = jnp.transpose(x_nchw, (0, 2, 3, 1))              # NHWC inside
    for w, b in params:
        cout, cin, kh, kw = w.shape
        patches, (B, OH, OW) = _im2col(x, k=kh, stride=2, pad=1)
        # (O,I,kh,kw) -> (kh,kw,I,O) -> (kh*kw*I, O): matches patch channel order.
        w_mat = jnp.transpose(w, (2, 3, 1, 0)).reshape(kh * kw * cin, cout)
        y = conv_relu_matmul(patches, w_mat, b.reshape(1, cout))
        x = y.reshape(B, OH, OW, cout)
    return jnp.transpose(x, (0, 3, 1, 2))                # NCHW like the module


# -----------------------------------------------------------------------------
# Parameters mirroring the module construction, plus a plain-JAX reference.
# -----------------------------------------------------------------------------
def make_encoder_params(key, out_channels, layers=2):
    chans = [3, out_channels * 2 ** (layers - 1)]
    c = chans[-1]
    while c > out_channels:
        c //= 2
        chans.append(c)
    params = []
    keys = jax.random.split(key, 2 * (len(chans) - 1))
    for i, (cin, cout) in enumerate(zip(chans[:-1], chans[1:])):
        bound = 1.0 / float((cin * 9) ** 0.5)            # torch default Conv2d init
        w = jax.random.uniform(keys[2 * i], (cout, cin, 3, 3), jnp.float32,
                               -bound, bound)
        b = jax.random.uniform(keys[2 * i + 1], (cout,), jnp.float32,
                               -bound, bound)
        params.append((w, b))
    return params


def encoder_reference(x_nchw, params):
    """Plain-JAX conv reference with exact nn.Conv2d semantics (cross-correlation)."""
    x = x_nchw
    for w, b in params:
        x = jax.lax.conv_general_dilated(
            x, w, window_strides=(2, 2), padding=((1, 1), (1, 1)),
            dimension_numbers=("NCHW", "OIHW", "NCHW"))
        x = jnp.maximum(x + b.reshape(1, -1, 1, 1), 0.0)
    return x


if __name__ == "__main__":
    # Small shapes consistent with the module: RGB input, out_channels=8, layers=2.
    B, C_in, H, W = 2, 3, 16, 16
    out_channels, layers = 8, 2

    key = jax.random.PRNGKey(0)
    k_x, k_p = jax.random.split(key)
    x = jax.random.normal(k_x, (B, C_in, H, W), jnp.float32)   # NCHW like torch
    params = make_encoder_params(k_p, out_channels, layers)

    out = unshared_encoder_forward(x, params)
    out = jax.block_until_ready(out)

    ref = encoder_reference(x, params)
    assert out.shape == (B, out_channels, H // 4, W // 4), out.shape
    assert jnp.allclose(out, ref, atol=1e-5, rtol=1e-5), \
        float(jnp.max(jnp.abs(out - ref)))

    print("KERNEL_OK")
</pallas_src>

<mosaic_0001>
module attributes {stable_mosaic.version = 11 : i64} {
  func.func @conv_mm_kernel(%arg0: i32, %arg1: memref<128x27xf32, #tpu.memory_space<vmem>>, %arg2: memref<27x16xf32, #tpu.memory_space<vmem>>, %arg3: memref<1x16xf32, #tpu.memory_space<vmem>>, %arg4: memref<128x16xf32, #tpu.memory_space<vmem>>) attributes {dimension_semantics = [#tpu.dimension_semantics<parallel>], iteration_bounds = array<i64: 1>, scalar_prefetch = 0 : i64, scratch_operands = 0 : i64, tpu.core_type = #tpu.core_type<tc>, window_params = [{transform_indices = @transform_0, window_bounds = array<i64: 128, 27>}, {pipeline_mode = #tpu.pipeline_mode<synchronous>, transform_indices = @transform_1, window_bounds = array<i64: 27, 16>}, {pipeline_mode = #tpu.pipeline_mode<synchronous>, transform_indices = @transform_2, window_bounds = array<i64: 1, 16>}, {transform_indices = @transform_3, window_bounds = array<i64: 128, 16>}]} {
    %c0 = arith.constant 0 : index
    %c0_0 = arith.constant 0 : index
    %0 = vector.load %arg1[%c0, %c0_0] : memref<128x27xf32, #tpu.memory_space<vmem>>, vector<128x27xf32>
    %c0_1 = arith.constant 0 : index
    %c0_2 = arith.constant 0 : index
    %1 = vector.load %arg2[%c0_1, %c0_2] : memref<27x16xf32, #tpu.memory_space<vmem>>, vector<27x16xf32>
    %cst = arith.constant dense<0.000000e+00> : vector<128x16xf32>
    %2 = tpu.matmul %0, %1, %cst {dimension_numbers = #tpu.dot_dimension_numbers<[1], [0], [0], [1], [0, 0, 1, 1], [], []>} : vector<128x27xf32>, vector<27x16xf32>, vector<128x16xf32> -> vector<128x16xf32>
    %c0_3 = arith.constant 0 : index
    %c0_4 = arith.constant 0 : index
    %3 = vector.load %arg3[%c0_3, %c0_4] : memref<1x16xf32, #tpu.memory_space<vmem>>, vector<1x16xf32>
    %4 = vector.broadcast %3 : vector<1x16xf32> to vector<128x16xf32>
    %5 = arith.addf %2, %4 : vector<128x16xf32>
    %cst_5 = arith.constant 0.000000e+00 : f32
    %6 = vector.broadcast %cst_5 : f32 to vector<128x16xf32>
    %7 = arith.maximumf %5, %6 : vector<128x16xf32>
    %c0_6 = arith.constant 0 : index
    %c0_7 = arith.constant 0 : index
    %8 = vector.load %arg4[%c0_6, %c0_7] : memref<128x16xf32, #tpu.memory_space<vmem>>, vector<128x16xf32>
    tpu.vector_store %arg4[%c0_6, %c0_7], %7 {strides = array<i32>} : memref<128x16xf32, #tpu.memory_space<vmem>>, vector<128x16xf32>,
    return
  }
  func.func @transform_0(%arg0: i32) -> (i32, i32) {
    %c0_i32 = arith.constant 0 : i32
    %c0_i32_0 = arith.constant 0 : i32
    return %arg0, %c0_i32 : i32, i32
  }
  func.func @transform_1(%arg0: i32) -> (i32, i32) {
    %c0_i32 = arith.constant 0 : i32
    %c0_i32_0 = arith.constant 0 : i32
    %c0_i32_1 = arith.constant 0 : i32
    return %c0_i32, %c0_i32_0 : i32, i32
  }
  func.func @transform_2(%arg0: i32) -> (i32, i32) {
    %c0_i32 = arith.constant 0 : i32
    %c0_i32_0 = arith.constant 0 : i32
    %c0_i32_1 = arith.constant 0 : i32
    return %c0_i32, %c0_i32_0 : i32, i32
  }
  func.func @transform_3(%arg0: i32) -> (i32, i32) {
    %c0_i32 = arith.constant 0 : i32
    %c0_i32_0 = arith.constant 0 : i32
    return %arg0, %c0_i32 : i32, i32
  }
}

module attributes {stable_mosaic.version = 11 : i64} {
  func.func @conv_mm_kernel(%arg0: i32, %arg1: memref<32x144xf32, #tpu.memory_space<vmem>>, %arg2: memref<144x8xf32, #tpu.memory_space<vmem>>, %arg3: memref<1x8xf32, #tpu.memory_space<vmem>>, %arg4: memref<32x8xf32, #tpu.memory_space<vmem>>) attributes {dimension_semantics = [#tpu.dimension_semantics<parallel>], iteration_bounds = array<i64: 1>, scalar_prefetch = 0 : i64, scratch_operands = 0 : i64, tpu.core_type = #tpu.core_type<tc>, window_params = [{transform_indices = @transform_0, window_bounds = array<i64: 32, 144>}, {pipeline_mode = #tpu.pipeline_mode<synchronous>, transform_indices = @transform_1, window_bounds = array<i64: 144, 8>}, {pipeline_mode = #tpu.pipeline_mode<synchronous>, transform_indices = @transform_2, window_bounds = array<i64: 1, 8>}, {transform_indices = @transform_3, window_bounds = array<i64: 32, 8>}]} {
    %c0 = arith.constant 0 : index
    %c0_0 = arith.constant 0 : index
    %0 = vector.load %arg1[%c0, %c0_0] : memref<32x144xf32, #tpu.memory_space<vmem>>, vector<32x144xf32>
    %c0_1 = arith.constant 0 : index
    %c0_2 = arith.constant 0 : index
    %1 = vector.load %arg2[%c0_1, %c0_2] : memref<144x8xf32, #tpu.memory_space<vmem>>, vector<144x8xf32>
    %cst = arith.constant dense<0.000000e+00> : vector<32x8xf32>
    %2 = tpu.matmul %0, %1, %cst {dimension_numbers = #tpu.dot_dimension_numbers<[1], [0], [0], [1], [0, 0, 1, 1], [], []>} : vector<32x144xf32>, vector<144x8xf32>, vector<32x8xf32> -> vector<32x8xf32>
    %c0_3 = arith.constant 0 : index
    %c0_4 = arith.constant 0 : index
    %3 = vector.load %arg3[%c0_3, %c0_4] : memref<1x8xf32, #tpu.memory_space<vmem>>, vector<1x8xf32>
    %4 = vector.broadcast %3 : vector<1x8xf32> to vector<32x8xf32>
    %5 = arith.addf %2, %4 : vector<32x8xf32>
    %cst_5 = arith.constant 0.000000e+00 : f32
    %6 = vector.broadcast %cst_5 : f32 to vector<32x8xf32>
    %7 = arith.maximumf %5, %6 : vector<32x8xf32>
    %c0_6 = arith.constant 0 : index
    %c0_7 = arith.constant 0 : index
    %8 = vector.load %arg4[%c0_6, %c0_7] : memref<32x8xf32, #tpu.memory_space<vmem>>, vector<32x8xf32>
    tpu.vector_store %arg4[%c0_6, %c0_7], %7 {strides = array<i32>} : memref<32x8xf32, #tpu.memory_space<vmem>>, vector<32x8xf32>,
    return
  }
  func.func @transform_0(%arg0: i32) -> (i32, i32) {
    %c0_i32 = arith.constant 0 : i32
    %c0_i32_0 = arith.constant 0 : i32
    return %arg0, %c0_i32 : i32, i32
  }
  func.func @transform_1(%arg0: i32) -> (i32, i32) {
    %c0_i32 = arith.constant 0 : i32
    %c0_i32_0 = arith.constant 0 : i32
    %c0_i32_1 = arith.constant 0 : i32
    return %c0_i32, %c0_i32_0 : i32, i32
  }
  func.func @transform_2(%arg0: i32) -> (i32, i32) {
    %c0_i32 = arith.constant 0 : i32
    %c0_i32_0 = arith.constant 0 : i32
    %c0_i32_1 = arith.constant 0 : i32
    return %c0_i32, %c0_i32_0 : i32, i32
  }
  func.func @transform_3(%arg0: i32) -> (i32, i32) {
    %c0_i32 = arith.constant 0 : i32
    %c0_i32_0 = arith.constant 0 : i32
    return %arg0, %c0_i32 : i32, i32
  }
}

</mosaic_0001>

<llo_original>
// kernel: unshared_encoder_forward.2
$region0: #{unshared_encoder_forward.2}
  #allocation0 [shape = 'u32[]', space=smem, size = 0x4, offset = 0x4, fixed_abs, tag = 'smem constant byte address 0x4 - core index']
  #allocation1 [shape = 'u32[72,128]{1,0:T(1,128)}', space=vmem, size = 0x9000, scoped, tag = 'internal scratch']
  %s0 = inlined_call_operand.vmem [shape: f32[128,27], index: 0, kind: input, shape index: {}]
  %s1 = inlined_call_operand.vmem [shape: f32[27,16], index: 1, kind: input, shape index: {}]
  %s2 = inlined_call_operand.vmem [shape: f32[1,16], index: 2, kind: input, shape index: {}]
  %s3 = inlined_call_operand.vmem [shape: f32[128,16], index: 3, kind: output, shape index: {}]
  %s4 = sld [smem:[#allocation0]]
  $region22: #{unshared_encoder_forward.2} parent=0
    _
  %s6 = ssub.s32 1, %s4
  %s7 = scalar_select 0, %s6, %s4
  // Predicated region
  $region2: #{unshared_encoder_forward.2} parent=0 // pred_check
    _
  $region3: #{unshared_encoder_forward.2} parent=0 // pred_check_branch
    %9 = sbr.rel (0) target = $region5
  $region4: #{unshared_encoder_forward.2} parent=0 // pred_region
    _
  $region5: #{unshared_encoder_forward.2} parent=0 // pred_fallthru
    _
  // Predicated region
  $region6: #{unshared_encoder_forward.2} parent=0 // pred_check
    _
  $region7: #{unshared_encoder_forward.2} parent=0 // pred_check_branch
    %11 = sbr.rel (0) target = $region9
  $region8: #{unshared_encoder_forward.2} parent=0 // pred_region
    _
  $region9: #{unshared_encoder_forward.2} parent=0 // pred_fallthru
    _
  // Predicated region
  $region10: #{unshared_encoder_forward.2} parent=0 // pred_check
    _
  $region11: #{unshared_encoder_forward.2} parent=0 // pred_check_branch
    %13 = sbr.rel (0) target = $region13
  $region12: #{unshared_encoder_forward.2} parent=0 // pred_region
    _
  $region13: #{unshared_encoder_forward.2} parent=0 // pred_fallthru
    _
  %v14 = vld [vmem:[%s0] sm:$0xff]
  %v15 = vld [vmem:[%s0 + $0x8] sm:$0xff]
  %v16 = vld [vmem:[%s0 + $0x10] sm:$0xff]
  %v17 = vld [vmem:[%s0 + $0x18] sm:$0xff]
  %v18 = vld [vmem:[%s0 + $0x20] sm:$0xff]
  %v19 = vld [vmem:[%s0 + $0x28] sm:$0xff]
  %v20 = vld [vmem:[%s0 + $0x30] sm:$0xff]
  %v21 = vld [vmem:[%s0 + $0x38] sm:$0xff]
  %v22 = vld [vmem:[%s0 + $0x40] sm:$0xff]
  %v23 = vld [vmem:[%s0 + $0x48] sm:$0xff]
  %v24 = vld [vmem:[%s0 + $0x50] sm:$0xff]
  %v25 = vld [vmem:[%s0 + $0x58] sm:$0xff]
  %v26 = vld [vmem:[%s0 + $0x60] sm:$0xff]
  %v27 = vld [vmem:[%s0 + $0x68] sm:$0xff]
  %v28 = vld [vmem:[%s0 + $0x70] sm:$0xff]
  %v29 = vld [vmem:[%s0 + $0x78] sm:$0xff]
  %v30 = vld [vmem:[%s1] sm:$0xff]
  %v31 = vld [vmem:[%s1 + $0x8] sm:$0xff]
  %v32 = vld [vmem:[%s1 + $0x10] sm:$0xff]
  %v33 = vld [vmem:[%s1 + $0x18] sm:$0x7]
  %v34 = vld [vmem:[%s2] sm:$0x1]
  %v36 = vperm.slane %v34, 0
  %vm38 = vcmask 220160
  %v40 = vsel %vm38, %v14, 0
  %v43 = vsel %vm38, %v15, 0
  %v46 = vsel %vm38, %v16, 0
  %v49 = vsel %vm38, %v17, 0
  %v52 = vsel %vm38, %v18, 0
  %v55 = vsel %vm38, %v19, 0
  %v58 = vsel %vm38, %v20, 0
  %v61 = vsel %vm38, %v21, 0
  %v64 = vsel %vm38, %v22, 0
  %v67 = vsel %vm38, %v23, 0
  %v70 = vsel %vm38, %v24, 0
  %v73 = vsel %vm38, %v25, 0
  %v76 = vsel %vm38, %v26, 0
  %v79 = vsel %vm38, %v27, 0
  %v82 = vsel %vm38, %v28, 0
  %v85 = vsel %vm38, %v29, 0
  %vm87 = vcmask 1042432
  %v89 = vsel %vm87, %v33, 0
  %91 = vmatpush.msra.mxu0 0.0
  %92 = vmatpush.msra.mxu0 0.0
  %93 = vmatpush.msra.mxu0 0.0
  %94 = vmatpush.msra.mxu0 0.0
  %95 = vmatpush.msra.mxu0 0.0
  %96 = vmatpush.msra.mxu0 0.0
  %97 = vmatpush.msra.mxu0 0.0
  %98 = vmatpush.msra.mxu0 0.0
  %99 = vmatpush.msra.mxu0 0.0
  %100 = vmatpush.msra.mxu0 0.0
  %101 = vmatpush.msra.mxu0 0.0
  %102 = vmatpush.msra.mxu0 0.0
  %103 = vmatpush.msra.mxu0 %v89
  %104 = vmatpush.msra.mxu0 %v32
  %105 = vmatpush.msra.mxu0 %v31
  %106 = vmatpush.msra.mxu0 %v30
  %107 = vmatmul.f32.gmra.mxu0 %v40
  %v108 = vpop.f32.mrf.mxu0
  %v109 = vadd.f32 %v36, %v108
  %110 = vmatmul.f32.gmra.mxu0 %v43
  %v111 = vpop.f32.mrf.mxu0
  %v112 = vadd.f32 %v36, %v111
  %113 = vmatmul.f32.gmra.mxu0 %v46
  %v114 = vpop.f32.mrf.mxu0
  %v115 = vadd.f32 %v36, %v114
  %116 = vmatmul.f32.gmra.mxu0 %v49
  %v117 = vpop.f32.mrf.mxu0
  %v118 = vadd.f32 %v36, %v117
  %119 = vmatmul.f32.gmra.mxu0 %v52
  %v120 = vpop.f32.mrf.mxu0
  %v121 = vadd.f32 %v36, %v120
  %122 = vmatmul.f32.gmra.mxu0 %v55
  %v123 = vpop.f32.mrf.mxu0
  %v124 = vadd.f32 %v36, %v123
  %125 = vmatmul.f32.gmra.mxu0 %v58
  %v126 = vpop.f32.mrf.mxu0
  %v127 = vadd.f32 %v36, %v126
  %128 = vmatmul.f32.gmra.mxu0 %v61
  %v129 = vpop.f32.mrf.mxu0
  %v130 = vadd.f32 %v36, %v129
  %131 = vmatmul.f32.gmra.mxu0 %v64
  %v132 = vpop.f32.mrf.mxu0
  %v133 = vadd.f32 %v36, %v132
  %134 = vmatmul.f32.gmra.mxu0 %v67
  %v135 = vpop.f32.mrf.mxu0
  %v136 = vadd.f32 %v36, %v135
  %137 = vmatmul.f32.gmra.mxu0 %v70
  %v138 = vpop.f32.mrf.mxu0
  %v139 = vadd.f32 %v36, %v138
  %140 = vmatmul.f32.gmra.mxu0 %v73
  %v141 = vpop.f32.mrf.mxu0
  %v142 = vadd.f32 %v36, %v141
  %143 = vmatmul.f32.gmra.mxu0 %v76
  %v144 = vpop.f32.mrf.mxu0
  %v145 = vadd.f32 %v36, %v144
  %146 = vmatmul.f32.gmra.mxu0 %v79
  %v147 = vpop.f32.mrf.mxu0
  %v148 = vadd.f32 %v36, %v147
  %149 = vmatmul.f32.gmra.mxu0 %v82
  %v150 = vpop.f32.mrf.mxu0
  %v151 = vadd.f32 %v36, %v150
  %152 = vmatmul.f32.gmra.mxu0 %v85
  %v153 = vpop.f32.mrf.mxu0
  %v154 = vadd.f32 %v36, %v153
  %155 = vdwg.mxu0
  %v156 = vmax.f32 %v109, 0.0
  %v157 = vmax.f32 %v112, 0.0
  %v158 = vmax.f32 %v115, 0.0
  %v159 = vmax.f32 %v118, 0.0
  %v160 = vmax.f32 %v121, 0.0
  %v161 = vmax.f32 %v124, 0.0
  %v162 = vmax.f32 %v127, 0.0
  %v163 = vmax.f32 %v130, 0.0
  %v164 = vmax.f32 %v133, 0.0
  %v165 = vmax.f32 %v136, 0.0
  %v166 = vmax.f32 %v139, 0.0
  %v167 = vmax.f32 %v142, 0.0
  %v168 = vmax.f32 %v145, 0.0
  %v169 = vmax.f32 %v148, 0.0
  %v170 = vmax.f32 %v151, 0.0
  %v171 = vmax.f32 %v154, 0.0
  %vm172 = vcmask 130048
  %173 = vst.msk [vmem:[%s3] sm:$0xff] %vm172, %v156
  %174 = vst.msk [vmem:[%s3 + $0x8] sm:$0xff] %vm172, %v157
  %175 = vst.msk [vmem:[%s3 + $0x10] sm:$0xff] %vm172, %v158
  %176 = vst.msk [vmem:[%s3 + $0x18] sm:$0xff] %vm172, %v159
  %177 = vst.msk [vmem:[%s3 + $0x20] sm:$0xff] %vm172, %v160
  %178 = vst.msk [vmem:[%s3 + $0x28] sm:$0xff] %vm172, %v161
  %179 = vst.msk [vmem:[%s3 + $0x30] sm:$0xff] %vm172, %v162
  %180 = vst.msk [vmem:[%s3 + $0x38] sm:$0xff] %vm172, %v163
  %181 = vst.msk [vmem:[%s3 + $0x40] sm:$0xff] %vm172, %v164
  %182 = vst.msk [vmem:[%s3 + $0x48] sm:$0xff] %vm172, %v165
  %183 = vst.msk [vmem:[%s3 + $0x50] sm:$0xff] %vm172, %v166
  %184 = vst.msk [vmem:[%s3 + $0x58] sm:$0xff] %vm172, %v167
  %185 = vst.msk [vmem:[%s3 + $0x60] sm:$0xff] %vm172, %v168
  %186 = vst.msk [vmem:[%s3 + $0x68] sm:$0xff] %vm172, %v169
  %187 = vst.msk [vmem:[%s3 + $0x70] sm:$0xff] %vm172, %v170
  %188 = vst.msk [vmem:[%s3 + $0x78] sm:$0xff] %vm172, %v171
  // Predicated region
  $region14: #{unshared_encoder_forward.2} parent=0 // pred_check
    _
  $region15: #{unshared_encoder_forward.2} parent=0 // pred_check_branch
    %190 = sbr.rel (0) target = $region17
  $region16: #{unshared_encoder_forward.2} parent=0 // pred_region
    _
  $region17: #{unshared_encoder_forward.2} parent=0 // pred_fallthru
    _
  // Predicated region
  $region18: #{unshared_encoder_forward.2} parent=0 // pred_check
    _
  $region19: #{unshared_encoder_forward.2} parent=0 // pred_check_branch
    %192 = sbr.rel (0) target = $region21
  $region20: #{unshared_encoder_forward.2} parent=0 // pred_region
    _
  $region21: #{unshared_encoder_forward.2} parent=0 // pred_fallthru
    _

// kernel: unshared_encoder_forward.3
$region0: #{unshared_encoder_forward.3}
  #allocation0 [shape = 'u32[]', space=smem, size = 0x4, offset = 0x4, fixed_abs, tag = 'smem constant byte address 0x4 - core index']
  #allocation1 [shape = 'u32[72,128]{1,0:T(1,128)}', space=vmem, size = 0x9000, scoped, tag = 'internal scratch']
  %s0 = inlined_call_operand.vmem [shape: f32[32,144], index: 0, kind: input, shape index: {}]
  %s1 = inlined_call_operand.vmem [shape: f32[144,8], index: 1, kind: input, shape index: {}]
  %s2 = inlined_call_operand.vmem [shape: f32[1,8], index: 2, kind: input, shape index: {}]
  %s3 = inlined_call_operand.hbm [shape: f32[32,8], index: 3, kind: output, shape index: {}]
  %s4 = sld [smem:[#allocation0]]
  $region22: #{unshared_encoder_forward.3} parent=0
    _
  %s6 = ssub.s32 1, %s4
  %s7 = scalar_select 0, %s6, %s4
  $region1: #{unshared_encoder_forward.3} parent=0
    #allocation2 [shape = 'u8[16384]{0}', space=vmem, size = 0x4000, scoped, tag = 'output window, operand 0, single buffered']
    #allocation3 [shape = 's32[1]{0}', space=sflag, size = 0x4, scoped, tag = 'scoped memory for unshared_encoder_forward.3']
    %8 = vsyncpa [#allocation3], 0
    // Predicated region
    $region2: #{unshared_encoder_forward.3} parent=1 // pred_check
      _
    $region3: #{unshared_encoder_forward.3} parent=1 // pred_check_branch
      %10 = sbr.rel (0) target = $region5
    $region4: #{unshared_encoder_forward.3} parent=1 // pred_region
      _
    $region5: #{unshared_encoder_forward.3} parent=1 // pred_fallthru
      _
    // Predicated region
    $region6: #{unshared_encoder_forward.3} parent=1 // pred_check
      _
    $region7: #{unshared_encoder_forward.3} parent=1 // pred_check_branch
      %12 = sbr.rel (0) target = $region9
    $region8: #{unshared_encoder_forward.3} parent=1 // pred_region
      _
    $region9: #{unshared_encoder_forward.3} parent=1 // pred_fallthru
      _
    // Predicated region
    $region10: #{unshared_encoder_forward.3} parent=1 // pred_check
      _
    $region11: #{unshared_encoder_forward.3} parent=1 // pred_check_branch
      %14 = sbr.rel (0) target = $region13
    $region12: #{unshared_encoder_forward.3} parent=1 // pred_region
      _
    $region13: #{unshared_encoder_forward.3} parent=1 // pred_fallthru
      _
    %v15 = vld [vmem:[%s0] sm:$0xff]
    %v16 = vld [vmem:[%s0 + $0x8] sm:$0xff]
    %v17 = vld [vmem:[%s0 + $0x10] sm:$0xff]
    %v18 = vld [vmem:[%s0 + $0x18] sm:$0xff]
    %v19 = vld [vmem:[%s0 + $0x20] sm:$0xff]
    %v20 = vld [vmem:[%s0 + $0x28] sm:$0xff]
    %v21 = vld [vmem:[%s0 + $0x30] sm:$0xff]
    %v22 = vld [vmem:[%s0 + $0x38] sm:$0xff]
    %v23 = vld [vmem:[%s1] sm:$0xff]
    %v24 = vld [vmem:[%s1 + $0x8] sm:$0xff]
    %v25 = vld [vmem:[%s1 + $0x10] sm:$0xff]
    %v26 = vld [vmem:[%s1 + $0x18] sm:$0xff]
    %v27 = vld [vmem:[%s1 + $0x20] sm:$0xff]
    %v28 = vld [vmem:[%s1 + $0x28] sm:$0xff]
    %v29 = vld [vmem:[%s1 + $0x30] sm:$0xff]
    %v30 = vld [vmem:[%s1 + $0x38] sm:$0xff]
    %v31 = vld [vmem:[%s1 + $0x40] sm:$0xff]
    %v32 = vld [vmem:[%s1 + $0x48] sm:$0xff]
    %v33 = vld [vmem:[%s1 + $0x50] sm:$0xff]
    %v34 = vld [vmem:[%s1 + $0x58] sm:$0xff]
    %v35 = vld [vmem:[%s1 + $0x60] sm:$0xff]
    %v36 = vld [vmem:[%s1 + $0x68] sm:$0xff]
    %v37 = vld [vmem:[%s1 + $0x70] sm:$0xff]
    %v38 = vld [vmem:[%s1 + $0x78] sm:$0xff]
    %v39 = vld [vmem:[%s1 + $0x80] sm:$0xff]
    %v40 = vld [vmem:[%s1 + $0x88] sm:$0xff]
    %v41 = vld [vmem:[%s2] sm:$0x1]
    %v43 = vperm.slane %v41, 0
    %vm45 = vcmask 130048
    %v47 = vsel %vm45, %v16, 0
    %v50 = vsel %vm45, %v18, 0
    %v53 = vsel %vm45, %v20, 0
    %v56 = vsel %vm45, %v22, 0
    %58 = vmatpush.msra.mxu0 %v38
    %59 = vmatpush.msra.mxu0 %v37
    %60 = vmatpush.msra.mxu0 %v36
    %61 = vmatpush.msra.mxu0 %v35
    %62 = vmatpush.msra.mxu0 %v34
    %63 = vmatpush.msra.mxu0 %v33
    %64 = vmatpush.msra.mxu0 %v32
    %65 = vmatpush.msra.mxu0 %v31
    %66 = vmatpush.msra.mxu0 %v30
    %67 = vmatpush.msra.mxu0 %v29
    %68 = vmatpush.msra.mxu0 %v28
    %69 = vmatpush.msra.mxu0 %v27
    %70 = vmatpush.msra.mxu0 %v26
    %71 = vmatpush.msra.mxu0 %v25
    %72 = vmatpush.msra.mxu0 %v24
    %73 = vmatpush.msra.mxu0 %v23
    %74 = vmatmul.f32.gmra.mxu0 %v15
    %v75 = vpop.f32.mrf.mxu0
    %v76 = vadd.f32 %v43, %v75
    %77 = vmatmul.f32.gmra.mxu0 %v17
    %v78 = vpop.f32.mrf.mxu0
    %v79 = vadd.f32 %v43, %v78
    %80 = vmatmul.f32.gmra.mxu0 %v19
    %v81 = vpop.f32.mrf.mxu0
    %v82 = vadd.f32 %v43, %v81
    %83 = vmatmul.f32.gmra.mxu0 %v21
    %v84 = vpop.f32.mrf.mxu0
    %v85 = vadd.f32 %v43, %v84
    %86 = vdwg.mxu0
    %87 = vmatpush.msra.mxu0 0.0
    %88 = vmatpush.msra.mxu0 0.0
    %89 = vmatpush.msra.mxu0 0.0
    %90 = vmatpush.msra.mxu0 0.0
    %91 = vmatpush.msra.mxu0 0.0
    %92 = vmatpush.msra.mxu0 0.0
    %93 = vmatpush.msra.mxu0 0.0
    %94 = vmatpush.msra.mxu0 0.0
    %95 = vmatpush.msra.mxu0 0.0
    %96 = vmatpush.msra.mxu0 0.0
    %97 = vmatpush.msra.mxu0 0.0
    %98 = vmatpush.msra.mxu0 0.0
    %99 = vmatpush.msra.mxu0 0.0
    %100 = vmatpush.msra.mxu0 0.0
    %101 = vmatpush.msra.mxu0 %v40
    %102 = vmatpush.msra.mxu0 %v39
    %103 = vmatmul.f32.gmra.mxu0 %v47
    %v104 = vpop.f32.mrf.mxu0
    %v105 = vadd.f32 %v76, %v104
    %106 = vmatmul.f32.gmra.mxu0 %v50
    %v107 = vpop.f32.mrf.mxu0
    %v108 = vadd.f32 %v79, %v107
    %109 = vmatmul.f32.gmra.mxu0 %v53
    %v110 = vpop.f32.mrf.mxu0
    %v111 = vadd.f32 %v82, %v110
    %112 = vmatmul.f32.gmra.mxu0 %v56
    %v113 = vpop.f32.mrf.mxu0
    %v114 = vadd.f32 %v85, %v113
    %115 = vdwg.mxu0
    %v116 = vmax.f32 %v105, 0.0
    %v117 = vmax.f32 %v108, 0.0
    %v118 = vmax.f32 %v111, 0.0
    %v119 = vmax.f32 %v114, 0.0
    %vm120 = vcmask 64512
    %121 = vst.msk [vmem:[#allocation2] sm:$0xff] %vm120, %v116
    %122 = vst.msk [vmem:[#allocation2 + $0x8] sm:$0xff] %vm120, %v117
    %123 = vst.msk [vmem:[#allocation2 + $0x10] sm:$0xff] %vm120, %v118
    %124 = vst.msk [vmem:[#allocation2 + $0x18] sm:$0xff] %vm120, %v119
    // Predicated region
    $region14: #{unshared_encoder_forward.3} parent=1 // pred_check
      _
    $region15: #{unshared_encoder_forward.3} parent=1 // pred_check_branch
      %126 = sbr.rel (0) target = $region17
    $region16: #{unshared_encoder_forward.3} parent=1 // pred_region
      %128 = vsyncadd [#allocation3], 0
      %s129 = sshll.u32 [#allocation2], 4
      %s130 = int_to_ptr.vmem [resolvable:$true] %s129
      %s131 = sshll.u32 %s3, 4
      %s132 = int_to_ptr.hbm [resolvable:$true] %s131
      %137 = dma.vmem_to_hbm [thread:$0]  %s130, 512, %s132, [#allocation3], 128, 128, 8
    $region17: #{unshared_encoder_forward.3} parent=1 // pred_fallthru
      _
    // Predicated region
    $region18: #{unshared_encoder_forward.3} parent=1 // pred_check
      _
    $region19: #{unshared_encoder_forward.3} parent=1 // pred_check_branch
      %139 = sbr.rel (0) target = $region21
    $region20: #{unshared_encoder_forward.3} parent=1 // pred_region
      %141 = dma.done [#allocation3], 512
    $region21: #{unshared_encoder_forward.3} parent=1 // pred_fallthru
      _
    %142 = vsyncpa [#allocation3], 1

</llo_original>
